<compile_context>
chip_gen: v5e
topology: v5e:2x2
jax: 0.10.0
libtpu: 0.0.40
codegen_flags: <defaults>
</compile_context>

<pallas_src>
import jax
import jax.numpy as jnp
from jax import lax
from jax.experimental import pallas as pl
from jax.experimental.pallas import tpu as pltpu

LANE = 128
ACC_ROWS = 8           # one (8,128) vreg-sized accumulator slab
MAX_TILE_ROWS = 2048   # (2048,128) f32 = 1 MiB per input tile
NUM_SHARDS = 2         # leading "parallel" axis (2 TCs on v7x; harmless elsewhere)


def _cdiv(a, b):
    return -(-a // b)


def _round_up(a, b):
    return _cdiv(a, b) * b


def accuracy_metric(outputs, targets, eps: float = 1e-05):
    """Pallas TPU implementation of Accuracy.forward."""
    o = outputs.reshape(-1)
    t = targets.reshape(-1)
    # keep native dtypes (bf16 / int8 / f32) to minimise HBM traffic; only
    # bools are widened (1-bit VMEM refs are awkward).
    if o.dtype == jnp.bool_:
        o = o.astype(jnp.int8)
    if t.dtype == jnp.bool_:
        t = t.astype(jnp.int8)

    n = o.shape[0]
    n_main = (n // LANE) * LANE          # part that forms whole 128-lane rows
    rem = n - n_main                     # ragged lane tail (< 128 elements)

    inter = jnp.float32(0.0)             # sum(o * t)
    ssum = jnp.float32(0.0)              # sum(o + t)

    if n_main > 0:
        rows = n_main // LANE
        o2 = o[:n_main].reshape(rows, LANE)
        t2 = t[:n_main].reshape(rows, LANE)

        tile_rows = min(MAX_TILE_ROWS, _round_up(rows, ACC_ROWS))
        n_fold = tile_rows // ACC_ROWS
        n_blocks = _cdiv(rows, tile_rows)
        num_shards = NUM_SHARDS if n_blocks >= NUM_SHARDS else 1
        blocks_per_shard = _cdiv(n_blocks, num_shards)
        # does any (logical) block extend past the real row count?
        needs_mask = num_shards * blocks_per_shard * tile_rows > rows

        def kernel(o_ref, t_ref, out_ref):
            j = pl.program_id(0)          # shard ("parallel")
            i = pl.program_id(1)          # block within shard ("arbitrary")

            @pl.when(i == 0)
            def _():
                out_ref[...] = jnp.zeros_like(out_ref)

            gstart = (j * blocks_per_shard + i) * tile_rows  # logical row start

            def body(k, carry):
                pacc, sacc = carry
                r0 = pl.multiple_of(k * ACC_ROWS, ACC_ROWS)
                of = o_ref[pl.ds(r0, ACC_ROWS), :].astype(jnp.float32)
                tf = t_ref[pl.ds(r0, ACC_ROWS), :].astype(jnp.float32)
                if needs_mask:  # static: only emitted when there is a ragged edge
                    rr = lax.broadcasted_iota(jnp.int32, (ACC_ROWS, LANE), 0)
                    valid = (rr + (gstart + r0)) < rows
                    of = jnp.where(valid, of, 0.0)
                    tf = jnp.where(valid, tf, 0.0)
                return pacc + of * tf, sacc + (of + tf)

            zeros = jnp.zeros((ACC_ROWS, LANE), jnp.float32)
            pacc, sacc = lax.fori_loop(0, n_fold, body, (zeros, zeros),
                                       unroll=min(8, n_fold))
            out_ref[0, 0] += pacc
            out_ref[0, 1] += sacc

        def in_map(j, i):
            # clamp duplicated / out-of-range blocks to the last real block;
            # the in-kernel mask zeroes their contribution.
            return (jnp.minimum(j * blocks_per_shard + i, n_blocks - 1), 0)

        partials = pl.pallas_call(
            kernel,
            out_shape=jax.ShapeDtypeStruct(
                (num_shards, 2, ACC_ROWS, LANE), jnp.float32),
            grid=(num_shards, blocks_per_shard),
            in_specs=[
                pl.BlockSpec((tile_rows, LANE), in_map),
                pl.BlockSpec((tile_rows, LANE), in_map),
            ],
            out_specs=pl.BlockSpec((1, 2, ACC_ROWS, LANE),
                                   lambda j, i: (j, 0, 0, 0)),
            compiler_params=pltpu.CompilerParams(
                dimension_semantics=("parallel", "arbitrary"),
            ),
        )(o2, t2)

        inter = inter + jnp.sum(partials[:, 0])
        ssum = ssum + jnp.sum(partials[:, 1])

    if rem > 0:
        # tiny (<128 element) lane tail: cheaper to handle in plain JAX than to
        # re-materialise padded copies of both full inputs.
        ot = o[n_main:].astype(jnp.float32)
        tt = t[n_main:].astype(jnp.float32)
        inter = inter + jnp.sum(ot * tt)
        ssum = ssum + jnp.sum(ot + tt)

    n_f = jnp.float32(n)
    return (2.0 * inter - ssum + n_f + eps) / (n_f + eps)


if __name__ == "__main__":
    key = jax.random.PRNGKey(0)
    k1, k2 = jax.random.split(key)
    # binary-segmentation-style batch: (N, C, H, W)
    outputs = jax.random.uniform(k1, (2, 4, 16, 16), dtype=jnp.float32)
    targets = (jax.random.uniform(k2, (2, 4, 16, 16)) > 0.5).astype(jnp.float32)

    acc = accuracy_metric(outputs, targets)
    jax.block_until_ready(acc)

    # pure-JAX reference (literal transcription of the PyTorch forward)
    o = outputs.reshape(-1)
    t = targets.reshape(-1)
    eps = 1e-05
    tp = jnp.sum(o * t)
    fp = jnp.sum(o * (1.0 - t))
    fn = jnp.sum((1.0 - o) * t)
    tn = jnp.sum((1.0 - o) * (1.0 - t))
    ref = (tp + tn + eps) / (tp + tn + fp + fn + eps)

    assert jnp.allclose(acc, ref, rtol=1e-4, atol=1e-5), (acc, ref)
    print("KERNEL_OK")
</pallas_src>

<mosaic_0001>
module attributes {stable_mosaic.version = 11 : i64} {
  func.func @kernel(%arg0: i32, %arg1: i32, %arg2: memref<16x128xf32, #tpu.memory_space<vmem>>, %arg3: memref<16x128xf32, #tpu.memory_space<vmem>>, %arg4: memref<1x2x8x128xf32, #tpu.memory_space<vmem>>) attributes {dimension_semantics = [#tpu.dimension_semantics<parallel>, #tpu.dimension_semantics<arbitrary>], iteration_bounds = array<i64: 1, 1>, scalar_prefetch = 0 : i64, scratch_operands = 0 : i64, tpu.core_type = #tpu.core_type<tc>, window_params = [{transform_indices = @transform_0, window_bounds = array<i64: 16, 128>}, {transform_indices = @transform_1, window_bounds = array<i64: 16, 128>}, {transform_indices = @transform_2, window_bounds = array<i64: 1, 2, 8, 128>}]} {
    %c0_i32 = arith.constant 0 : i32
    %0 = arith.cmpi eq, %arg1, %c0_i32 : i32
    %1 = arith.extui %0 : i1 to i32
    %c0_i32_0 = arith.constant 0 : i32
    %2 = arith.cmpi ne, %1, %c0_i32_0 : i32
    scf.if %2 {
      %cst_21 = arith.constant 0.000000e+00 : f32
      %36 = vector.broadcast %cst_21 : f32 to vector<1x2x8x128xf32>
      %c0_22 = arith.constant 0 : index
      %c0_23 = arith.constant 0 : index
      %c0_24 = arith.constant 0 : index
      %c0_25 = arith.constant 0 : index
      %37 = vector.load %arg4[%c0_22, %c0_23, %c0_24, %c0_25] : memref<1x2x8x128xf32, #tpu.memory_space<vmem>>, vector<1x2x8x128xf32>
      tpu.vector_store %arg4[%c0_22, %c0_23, %c0_24, %c0_25], %36 {strides = array<i32>} : memref<1x2x8x128xf32, #tpu.memory_space<vmem>>, vector<1x2x8x128xf32>,
    } else {
    }
    %cst = arith.constant 0.000000e+00 : f32
    %3 = vector.broadcast %cst : f32 to vector<8x128xf32>
    %c0_i32_1 = arith.constant 0 : i32
    %c8_i32 = arith.constant 8 : i32
    %4 = arith.muli %c0_i32_1, %c8_i32 : i32
    %5 = tpu.assume_multiple %4, 8 : i32
    %6 = arith.index_cast %5 : i32 to index
    %c0 = arith.constant 0 : index
    %7 = vector.load %arg2[%6, %c0] : memref<16x128xf32, #tpu.memory_space<vmem>>, vector<8x128xf32>
    %8 = arith.index_cast %5 : i32 to index
    %c0_2 = arith.constant 0 : index
    %9 = vector.load %arg3[%8, %c0_2] : memref<16x128xf32, #tpu.memory_space<vmem>>, vector<8x128xf32>
    %10 = arith.mulf %7, %9 : vector<8x128xf32>
    %11 = arith.addf %3, %10 : vector<8x128xf32>
    %12 = arith.addf %7, %9 : vector<8x128xf32>
    %13 = arith.addf %3, %12 : vector<8x128xf32>
    %c1_i32 = arith.constant 1 : i32
    %c8_i32_3 = arith.constant 8 : i32
    %14 = arith.muli %c1_i32, %c8_i32_3 : i32
    %15 = tpu.assume_multiple %14, 8 : i32
    %16 = arith.index_cast %15 : i32 to index
    %c0_4 = arith.constant 0 : index
    %17 = vector.load %arg2[%16, %c0_4] : memref<16x128xf32, #tpu.memory_space<vmem>>, vector<8x128xf32>
    %18 = arith.index_cast %15 : i32 to index
    %c0_5 = arith.constant 0 : index
    %19 = vector.load %arg3[%18, %c0_5] : memref<16x128xf32, #tpu.memory_space<vmem>>, vector<8x128xf32>
    %20 = arith.mulf %17, %19 : vector<8x128xf32>
    %21 = arith.addf %11, %20 : vector<8x128xf32>
    %22 = arith.addf %17, %19 : vector<8x128xf32>
    %23 = arith.addf %13, %22 : vector<8x128xf32>
    %c2_i32 = arith.constant 2 : i32
    %c0_6 = arith.constant 0 : index
    %c0_7 = arith.constant 0 : index
    %c0_8 = arith.constant 0 : index
    %c0_9 = arith.constant 0 : index
    %24 = vector.load %arg4[%c0_6, %c0_7, %c0_8, %c0_9] : memref<1x2x8x128xf32, #tpu.memory_space<vmem>>, vector<1x1x8x128xf32>
    %25 = vector.shape_cast %24 : vector<1x1x8x128xf32> to vector<8x128xf32>
    %26 = arith.addf %25, %21 : vector<8x128xf32>
    %c0_10 = arith.constant 0 : index
    %c0_11 = arith.constant 0 : index
    %c0_12 = arith.constant 0 : index
    %c0_13 = arith.constant 0 : index
    %27 = vector.load %arg4[%c0_10, %c0_11, %c0_12, %c0_13] : memref<1x2x8x128xf32, #tpu.memory_space<vmem>>, vector<1x1x8x128xf32>
    %28 = vector.shape_cast %27 : vector<1x1x8x128xf32> to vector<8x128xf32>
    %29 = vector.shape_cast %26 : vector<8x128xf32> to vector<1x1x8x128xf32>
    tpu.vector_store %arg4[%c0_10, %c0_11, %c0_12, %c0_13], %29 {strides = array<i32>} : memref<1x2x8x128xf32, #tpu.memory_space<vmem>>, vector<1x1x8x128xf32>,
    %c0_14 = arith.constant 0 : index
    %c1 = arith.constant 1 : index
    %c0_15 = arith.constant 0 : index
    %c0_16 = arith.constant 0 : index
    %30 = vector.load %arg4[%c0_14, %c1, %c0_15, %c0_16] : memref<1x2x8x128xf32, #tpu.memory_space<vmem>>, vector<1x1x8x128xf32>
    %31 = vector.shape_cast %30 : vector<1x1x8x128xf32> to vector<8x128xf32>
    %32 = arith.addf %31, %23 : vector<8x128xf32>
    %c0_17 = arith.constant 0 : index
    %c1_18 = arith.constant 1 : index
    %c0_19 = arith.constant 0 : index
    %c0_20 = arith.constant 0 : index
    %33 = vector.load %arg4[%c0_17, %c1_18, %c0_19, %c0_20] : memref<1x2x8x128xf32, #tpu.memory_space<vmem>>, vector<1x1x8x128xf32>
    %34 = vector.shape_cast %33 : vector<1x1x8x128xf32> to vector<8x128xf32>
    %35 = vector.shape_cast %32 : vector<8x128xf32> to vector<1x1x8x128xf32>
    tpu.vector_store %arg4[%c0_17, %c1_18, %c0_19, %c0_20], %35 {strides = array<i32>} : memref<1x2x8x128xf32, #tpu.memory_space<vmem>>, vector<1x1x8x128xf32>,
    return
  }
  func.func @transform_0(%arg0: i32, %arg1: i32) -> (i32, i32) {
    %c1_i32 = arith.constant 1 : i32
    %0 = arith.muli %arg0, %c1_i32 : i32
    %1 = arith.addi %0, %arg1 : i32
    %c0_i32 = arith.constant 0 : i32
    %2 = arith.minsi %1, %c0_i32 : i32
    %c0_i32_0 = arith.constant 0 : i32
    %c0_i32_1 = arith.constant 0 : i32
    return %2, %c0_i32_0 : i32, i32
  }
  func.func @transform_1(%arg0: i32, %arg1: i32) -> (i32, i32) {
    %c1_i32 = arith.constant 1 : i32
    %0 = arith.muli %arg0, %c1_i32 : i32
    %1 = arith.addi %0, %arg1 : i32
    %c0_i32 = arith.constant 0 : i32
    %2 = arith.minsi %1, %c0_i32 : i32
    %c0_i32_0 = arith.constant 0 : i32
    %c0_i32_1 = arith.constant 0 : i32
    return %2, %c0_i32_0 : i32, i32
  }
  func.func @transform_2(%arg0: i32, %arg1: i32) -> (i32, i32, i32, i32) {
    %c0_i32 = arith.constant 0 : i32
    %c0_i32_0 = arith.constant 0 : i32
    %c0_i32_1 = arith.constant 0 : i32
    %c0_i32_2 = arith.constant 0 : i32
    return %arg0, %c0_i32, %c0_i32_0, %c0_i32_1 : i32, i32, i32, i32
  }
}

</mosaic_0001>

<llo_original>
// kernel: tpu_custom_call.1
$region0: #{tpu_custom_call.1}
  #allocation0 [shape = 'u32[]', space=smem, size = 0x4, offset = 0x4, fixed_abs, tag = 'smem constant byte address 0x4 - core index']
  #allocation1 [shape = 'u32[72,128]{1,0:T(1,128)}', space=vmem, size = 0x9000, scoped, tag = 'internal scratch']
  %s0 = inlined_call_operand.hbm [shape: f32[16,128], index: 0, kind: input, shape index: {}]
  %s1 = inlined_call_operand.hbm [shape: f32[16,128], index: 1, kind: input, shape index: {}]
  %s2 = inlined_call_operand.hbm [shape: f32[1,2,8,128], index: 2, kind: output, shape index: {}]
  %s3 = sld [smem:[#allocation0]]
  $region30: #{tpu_custom_call.1} parent=0
    _
  %s5 = ssub.s32 1, %s3
  %s6 = scalar_select 0, %s5, %s3
  $region1: #{tpu_custom_call.1} parent=0
    #allocation2 [shape = 'u8[8192]{0}', space=vmem, size = 0x2000, scoped, tag = 'input window, operand 0, single buffered']
    #allocation3 [shape = 's32[1]{0}', space=sflag, size = 0x4, scoped, tag = 'scoped memory for tpu_custom_call.1']
    #allocation4 [shape = 's32[1]{0}', space=sflag, size = 0x4, scoped, tag = 'scoped memory for tpu_custom_call.1']
    #allocation5 [shape = 'u8[8192]{0}', space=vmem, size = 0x2000, scoped, tag = 'input window, operand 1, single buffered']
    #allocation6 [shape = 's32[1]{0}', space=sflag, size = 0x4, scoped, tag = 'scoped memory for tpu_custom_call.1']
    #allocation7 [shape = 'u8[8192]{0}', space=vmem, size = 0x2000, scoped, tag = 'output window, operand 0, single buffered']
    %7 = vsyncpa [#allocation3], 0
    %8 = vsyncpa [#allocation6], 0
    %9 = vsyncpa [#allocation4], 0
    // Predicated region
    $region2: #{tpu_custom_call.1} parent=1 // pred_check
      _
    $region3: #{tpu_custom_call.1} parent=1 // pred_check_branch
      %11 = sbr.rel (0) target = $region5
    $region4: #{tpu_custom_call.1} parent=1 // pred_region
      %s12 = sadd.s32 0, 0
      %p13 = scmp.lt.s32.totalorder %s12, 0
      %s14 = scalar_select %p13, %s12, 0
      %s15 = smul.u32 2, %s14
      %17 = vsyncadd [#allocation3], 0
      %s18 = smul.addr %s15, 8
      %s19 = scalar_lea.hbm %s0, %s18
      %s20 = sshll.u32 %s19, 4
      %s21 = int_to_ptr.hbm [resolvable:$true] %s20
      %s22 = sshll.u32 [#allocation2], 4
      %s23 = int_to_ptr.vmem [resolvable:$true] %s22
      %28 = dma.hbm_to_vmem [thread:$0]  %s21, 256, %s23, [#allocation3], 128, 128, 8
    $region5: #{tpu_custom_call.1} parent=1 // pred_fallthru
      _
    // Predicated region
    $region6: #{tpu_custom_call.1} parent=1 // pred_check
      _
    $region7: #{tpu_custom_call.1} parent=1 // pred_check_branch
      %30 = sbr.rel (0) target = $region9
    $region8: #{tpu_custom_call.1} parent=1 // pred_region
      %s31 = sadd.s32 0, 0
      %p32 = scmp.lt.s32.totalorder %s31, 0
      %s33 = scalar_select %p32, %s31, 0
      %s34 = smul.u32 2, %s33
      %36 = vsyncadd [#allocation6], 0
      %s37 = smul.addr %s34, 8
      %s38 = scalar_lea.hbm %s1, %s37
      %s39 = sshll.u32 %s38, 4
      %s40 = int_to_ptr.hbm [resolvable:$true] %s39
      %s41 = sshll.u32 [#allocation5], 4
      %s42 = int_to_ptr.vmem [resolvable:$true] %s41
      %47 = dma.hbm_to_vmem [thread:$0]  %s40, 256, %s42, [#allocation6], 128, 128, 8
    $region9: #{tpu_custom_call.1} parent=1 // pred_fallthru
      _
    // Predicated region
    $region10: #{tpu_custom_call.1} parent=1 // pred_check
      _
    $region11: #{tpu_custom_call.1} parent=1 // pred_check_branch
      %49 = sbr.rel (0) target = $region13
    $region12: #{tpu_custom_call.1} parent=1 // pred_region
      %51 = dma.done [#allocation3], 256
    $region13: #{tpu_custom_call.1} parent=1 // pred_fallthru
      _
    // Predicated region
    $region14: #{tpu_custom_call.1} parent=1 // pred_check
      _
    $region15: #{tpu_custom_call.1} parent=1 // pred_check_branch
      %53 = sbr.rel (0) target = $region17
    $region16: #{tpu_custom_call.1} parent=1 // pred_region
      %55 = dma.done [#allocation6], 256
    $region17: #{tpu_custom_call.1} parent=1 // pred_fallthru
      _
    %s56 = sadd.s32 0, 0
    %p57 = scmp.lt.s32.totalorder %s56, 0
    %s58 = scalar_select %p57, %s56, 0
    %s59 = smul.u32 2, %s58
    %s60 = sadd.s32 0, 0
    %p61 = scmp.lt.s32.totalorder %s60, 0
    %s62 = scalar_select %p61, %s60, 0
    %s63 = smul.u32 2, %s62
    %p64 = scmp.eq.s32.totalorder 0, 0
    // Predicated region
    $region18: #{tpu_custom_call.1} parent=1 // pred_check
      %p65 = pneg %p64
    $region19: #{tpu_custom_call.1} parent=1 // pred_check_branch
      %67 = sbr.rel (%p65) target = $region21
    $region20: #{tpu_custom_call.1} parent=1 // pred_region
      %68 = vst [vmem:[#allocation7] sm:$0xff] 0.0
      %69 = vst [vmem:[#allocation7 + $0x8] sm:$0xff] 0.0
    $region21: #{tpu_custom_call.1} parent=1 // pred_fallthru
      _
    %v70 = vld [vmem:[#allocation2] sm:$0xff]
    %v71 = vld [vmem:[#allocation5] sm:$0xff]
    %v72 = vmul.f32 %v70, %v71
    %v73 = vadd.f32 %v72, 0.0
    %v74 = vadd.f32 %v70, %v71
    %v75 = vadd.f32 %v74, 0.0
    %s76 = scalar_lea.vmem [#allocation2], 8
    %v77 = vld [vmem:[%s76] sm:$0xff]
    %s78 = scalar_lea.vmem [#allocation5], 8
    %v79 = vld [vmem:[%s78] sm:$0xff]
    %v80 = vmul.f32 %v77, %v79
    %v81 = vadd.f32 %v73, %v80
    %v82 = vadd.f32 %v77, %v79
    %v83 = vadd.f32 %v75, %v82
    %v84 = vld [vmem:[#allocation7] sm:$0xff]
    %v85 = vadd.f32 %v84, %v81
    %86 = vst [vmem:[#allocation7] sm:$0xff] %v85
    %s87 = scalar_lea.vmem [#allocation7], 8
    %v88 = vld [vmem:[%s87] sm:$0xff]
    %v89 = vadd.f32 %v88, %v83
    %90 = vst [vmem:[%s87] sm:$0xff] %v89
    // Predicated region
    $region22: #{tpu_custom_call.1} parent=1 // pred_check
      _
    $region23: #{tpu_custom_call.1} parent=1 // pred_check_branch
      %92 = sbr.rel (0) target = $region25
    $region24: #{tpu_custom_call.1} parent=1 // pred_region
      %94 = vsyncadd [#allocation4], 0
      %s95 = sshll.u32 [#allocation7], 4
      %s96 = int_to_ptr.vmem [resolvable:$true] %s95
      %s97 = sshll.u32 %s2, 4
      %s98 = int_to_ptr.hbm [resolvable:$true] %s97
      %103 = dma.vmem_to_hbm [thread:$0]  %s96, 256, %s98, [#allocation4], 128, 128, 8
    $region25: #{tpu_custom_call.1} parent=1 // pred_fallthru
      _
    // Predicated region
    $region26: #{tpu_custom_call.1} parent=1 // pred_check
      _
    $region27: #{tpu_custom_call.1} parent=1 // pred_check_branch
      %105 = sbr.rel (0) target = $region29
    $region28: #{tpu_custom_call.1} parent=1 // pred_region
      %107 = dma.done [#allocation4], 256
    $region29: #{tpu_custom_call.1} parent=1 // pred_fallthru
      _
    %108 = vsyncpa [#allocation3], 1
    %109 = vsyncpa [#allocation6], 1
    %110 = vsyncpa [#allocation4], 1

</llo_original>
